<compile_context>
chip_gen: v7x
topology: tpu7x:2x2x1
jax: 0.10.0
libtpu: 0.0.40
codegen_flags: <defaults>
</compile_context>

<pallas_src>
import functools

import jax
import jax.numpy as jnp
from jax import lax
from jax.experimental import pallas as pl
from jax.experimental.pallas import tpu as pltpu


def _convblock_kernel(*refs, K, dilation, left, L_out, L_valid,
                      has_downsample, compute_dtype):
    """One batch tile. Layouts are NLC (channels on lanes) throughout.

      x_ref     : (Bt, Lp, C_in)   pre-padded ('same' halo + round-to-8), bf16
      w1/w2_ref : (K, C, C_out)    per-tap weight matrices, bf16
      s*/t*_ref : (1, C_out)       folded conv-bias + BatchNorm scale/shift, f32
      wd/bd_ref : (C_in, C_out)/(1, C_out)  1x1 downsample (optional)
      o_ref     : (Bt, L_out, C_out)
      hpad_ref  : (Bt, Lp, C_out)  persistent VMEM scratch (conv2 padded input)
    """
    if has_downsample:
        (x_ref, w1_ref, s1_ref, t1_ref, w2_ref, s2_ref, t2_ref,
         wd_ref, bd_ref, o_ref, hpad_ref) = refs
    else:
        (x_ref, w1_ref, s1_ref, t1_ref, w2_ref, s2_ref, t2_ref,
         o_ref, hpad_ref) = refs
        wd_ref = bd_ref = None

    Bt, Lp, C_in = x_ref.shape
    C_out = o_ref.shape[-1]
    M = Bt * L_out

    def conv(src_ref, w_ref):
        # Tap-accumulated conv: K whole-tile slices -> K 2-D MXU matmuls with
        # f32 accumulation.  No per-batch loop, no transpose, no concat; the
        # (Bt,L,C)->(Bt*L,C) collapse is layout-free because L_out % 8 == 0.
        acc = None
        for t in range(K):
            v = src_ref[:, t * dilation:t * dilation + L_out, :]
            v = v.reshape(M, v.shape[-1])
            p = jnp.dot(v, w_ref[t], preferred_element_type=jnp.float32)
            acc = p if acc is None else acc + p
        return acc

    # ---- 1x1 downsample residual: no dependence on the convs, issued early
    # so the scheduler can slot it into MXU bubbles. ---------------------------
    if has_downsample:
        res = jnp.dot(x_ref[:, left:left + L_out, :].reshape(M, C_in),
                      wd_ref[...], preferred_element_type=jnp.float32)
        res = res + bd_ref[...]

    # ---- conv1 + folded bias/BN + ReLU (epilogue in f32: v5e-safe) -----------
    h = jnp.maximum(conv(x_ref, w1_ref) * s1_ref[...] + t1_ref[...], 0.0)

    # ---- stage conv2's 'same'-padded input in the persistent scratch ---------
    # Halo rows (and the L_valid..L_out round-to-8 rows, which hold don't-care
    # values) are re-zeroed every step: this is a handful of rows and is safe
    # under the 'parallel' batch axis (per-core scratch => no one-shot init).
    if left:
        hpad_ref[:, :left, :] = jnp.zeros((Bt, left, C_out), compute_dtype)
    tail = Lp - (left + L_valid)
    if tail:
        hpad_ref[:, left + L_valid:, :] = jnp.zeros((Bt, tail, C_out),
                                                    compute_dtype)
    h3 = h.reshape(Bt, L_out, C_out)
    hpad_ref[:, left:left + L_valid, :] = (
        h3[:, :L_valid, :].astype(compute_dtype))

    # ---- conv2 + folded bias/BN + ReLU ---------------------------------------
    h2 = jnp.maximum(conv(hpad_ref, w2_ref) * s2_ref[...] + t2_ref[...], 0.0)

    # ---- residual add + final ReLU.  Identity residual is re-read from the
    # resident x block only here (no value kept live across both convs). ------
    if not has_downsample:
        res = x_ref[:, left:left + L_out, :].reshape(M, C_in).astype(jnp.float32)
    out = jnp.maximum(h2 + res, 0.0)
    o_ref[...] = out.reshape(Bt, L_out, C_out).astype(o_ref.dtype)


def _estimate_vmem_bytes(Bt, Lp, L_out, C_in, C_out, out_bytes, K):
    bf16, f32 = 2, 4
    blocks = 2 * Bt * Lp * C_in * bf16 + 2 * Bt * L_out * C_out * out_bytes
    scratch = Bt * Lp * C_out * bf16
    # Rough live intermediates: one tap slice + f32 acc/h/h2/res + bf16 copy.
    live = Bt * L_out * (C_in * (bf16 + f32) + C_out * (4 * f32 + bf16))
    weights = K * (C_in + C_out) * C_out * bf16 * 2
    return blocks + scratch + live + weights


def _pick_batch_tile(B, Lp, L_out, C_in, C_out, out_bytes, K,
                     budget=24 << 20):
    """Largest divisor of B that (a) keeps the per-step VMEM estimate within a
    v7x-safe budget and (b) keeps the grid extent >= 2 when B > 1 so both
    v7x TensorCores get work along the 'parallel' batch axis."""
    best = 1
    for bt in range(1, B + 1):
        if B % bt:
            continue
        if B > 1 and B // bt < 2:
            continue
        if _estimate_vmem_bytes(bt, Lp, L_out, C_in, C_out, out_bytes,
                                K) <= budget:
            best = bt
    return best


def conv_block_1d_forward(x, params, *, kernel_size, dilation,
                          batch_tile=None, compute_dtype=jnp.bfloat16):
    """ConvBlock1d forward.  x: (B, C_in, L) (PyTorch NCL) -> (B, C_out, L)."""
    B, C_in, L = x.shape
    C_out = params["w1"].shape[0]
    K = kernel_size
    eps = 1e-5
    total = dilation * (K - 1)               # PyTorch 'same' padding rule
    left = total // 2
    right = total - left
    L_out = -(-L // 8) * 8                   # round L up to a sublane multiple
    Lp = left + L_out + right

    f32 = jnp.float32
    # Per-tap weight matrices (K, C, C_out): each conv is K MXU accumulates.
    w1p = jnp.transpose(params["w1"].astype(f32), (2, 1, 0)).astype(compute_dtype)
    w2p = jnp.transpose(params["w2"].astype(f32), (2, 1, 0)).astype(compute_dtype)

    # Fold conv bias + BatchNorm into per-channel scale/shift.
    # TODO(synk): BatchNorm uses inference-mode (running-stat) semantics;
    # training-mode batch statistics are not reproduced.
    s1 = (params["bn1_gamma"] / jnp.sqrt(params["bn1_var"] + eps)).astype(f32)
    t1 = (params["bn1_beta"] + s1 * (params["b1"] - params["bn1_mean"])).astype(f32)
    s2 = (params["bn2_gamma"] / jnp.sqrt(params["bn2_var"] + eps)).astype(f32)
    t2 = (params["bn2_beta"] + s2 * (params["b2"] - params["bn2_mean"])).astype(f32)
    s1, t1, s2, t2 = (v[None, :] for v in (s1, t1, s2, t2))

    has_downsample = params.get("wd") is not None
    if not has_downsample:
        assert C_in == C_out, "identity residual requires C_in == C_out"

    # NCL -> NLC + 'same' halo + round-to-8 zero rows: one fused XLA op, so
    # the kernel itself is transpose- and pad-free.
    x_nlc = jnp.transpose(x, (0, 2, 1)).astype(compute_dtype)
    x_pad = jnp.pad(x_nlc, ((0, 0), (left, Lp - left - L), (0, 0)))

    out_dtype = x.dtype
    out_bytes = jnp.dtype(out_dtype).itemsize
    if batch_tile is None:
        batch_tile = _pick_batch_tile(B, Lp, L_out, C_in, C_out, out_bytes, K)
    Bt = batch_tile
    assert B % Bt == 0, (B, Bt)
    # TODO(synk): for very long L / wide C the block should also be tiled along
    # L with a dilation*(K-1) halo; only batch tiling is implemented here.

    def const_spec(a):
        return pl.BlockSpec(a.shape, lambda i, _n=a.ndim: (0,) * _n)

    operands = [x_pad, w1p, s1, t1, w2p, s2, t2]
    in_specs = [
        pl.BlockSpec((Bt, Lp, C_in), lambda i: (i, 0, 0)),
        const_spec(w1p), const_spec(s1), const_spec(t1),
        const_spec(w2p), const_spec(s2), const_spec(t2),
    ]
    if has_downsample:
        wd = jnp.transpose(params["wd"][:, :, 0].astype(f32)).astype(compute_dtype)
        bd = params["bd"].astype(f32)[None, :]
        operands += [wd, bd]
        in_specs += [const_spec(wd), const_spec(bd)]

    kernel = functools.partial(
        _convblock_kernel, K=K, dilation=dilation, left=left,
        L_out=L_out, L_valid=L, has_downsample=has_downsample,
        compute_dtype=compute_dtype)

    est = _estimate_vmem_bytes(Bt, Lp, L_out, C_in, C_out, out_bytes, K)
    # Raise the scoped-VMEM limit (v5e default is 16 MiB) but stay v7x-safe.
    vmem_limit = int(min(48 << 20, max(32 << 20, int(1.5 * est) + (4 << 20))))

    out_nlc = pl.pallas_call(
        kernel,
        out_shape=jax.ShapeDtypeStruct((B, L_out, C_out), out_dtype),
        grid_spec=pltpu.PrefetchScalarGridSpec(
            num_scalar_prefetch=0,
            grid=(B // Bt,),
            in_specs=in_specs,
            out_specs=pl.BlockSpec((Bt, L_out, C_out), lambda i: (i, 0, 0)),
            scratch_shapes=[pltpu.VMEM((Bt, Lp, C_out), compute_dtype)],
        ),
        compiler_params=pltpu.CompilerParams(
            dimension_semantics=("parallel",),
            vmem_limit_bytes=vmem_limit),
    )(*operands)

    # NLC -> NCL and crop the round-to-8 rows: one fused XLA op.
    return jnp.transpose(out_nlc, (0, 2, 1))[:, :, :L]


def reference_forward(x, params, *, kernel_size, dilation,
                      compute_dtype=jnp.float32):
    """Pure-JAX reference mirroring the PyTorch forward (eval-mode BN).

    `compute_dtype` casts conv inputs/weights (f32 accumulation) so the
    kernel's bf16 MXU path can be validated tightly as well as against f32."""
    eps = 1e-5
    total = dilation * (kernel_size - 1)
    left = total // 2
    right = total - left
    cd = compute_dtype

    def conv1d(z, w, b, pad, dil):
        y = lax.conv_general_dilated(
            z.astype(cd), w.astype(cd), window_strides=(1,), padding=[pad],
            rhs_dilation=(dil,), dimension_numbers=("NCH", "OIH", "NCH"),
            preferred_element_type=jnp.float32)
        return y + b[None, :, None]

    def bn(z, g, bt, m, v):
        return ((z - m[None, :, None]) / jnp.sqrt(v + eps)[None, :, None]
                * g[None, :, None] + bt[None, :, None])

    h = jax.nn.relu(bn(conv1d(x, params["w1"], params["b1"], (left, right), dilation),
                       params["bn1_gamma"], params["bn1_beta"],
                       params["bn1_mean"], params["bn1_var"]))
    h = jax.nn.relu(bn(conv1d(h, params["w2"], params["b2"], (left, right), dilation),
                       params["bn2_gamma"], params["bn2_beta"],
                       params["bn2_mean"], params["bn2_var"]))
    if params.get("wd") is not None:
        res = conv1d(x, params["wd"], params["bd"], (0, 0), 1)
    else:
        # mirror the kernel's bf16-quantized identity residual
        res = x.astype(cd).astype(jnp.float32)
    return jax.nn.relu(h + res)


if __name__ == "__main__":
    def make_params(key, C_in, C_out, K, with_downsample):
        ks = jax.random.split(key, 16)
        p = dict(
            w1=0.1 * jax.random.normal(ks[0], (C_out, C_in, K), jnp.float32),
            b1=0.1 * jax.random.normal(ks[1], (C_out,), jnp.float32),
            bn1_gamma=1.0 + 0.1 * jax.random.normal(ks[2], (C_out,), jnp.float32),
            bn1_beta=0.1 * jax.random.normal(ks[3], (C_out,), jnp.float32),
            bn1_mean=0.1 * jax.random.normal(ks[4], (C_out,), jnp.float32),
            bn1_var=0.5 + jnp.abs(jax.random.normal(ks[5], (C_out,), jnp.float32)),
            w2=0.1 * jax.random.normal(ks[6], (C_out, C_out, K), jnp.float32),
            b2=0.1 * jax.random.normal(ks[7], (C_out,), jnp.float32),
            bn2_gamma=1.0 + 0.1 * jax.random.normal(ks[8], (C_out,), jnp.float32),
            bn2_beta=0.1 * jax.random.normal(ks[9], (C_out,), jnp.float32),
            bn2_mean=0.1 * jax.random.normal(ks[10], (C_out,), jnp.float32),
            bn2_var=0.5 + jnp.abs(jax.random.normal(ks[11], (C_out,), jnp.float32)),
            wd=None, bd=None,
        )
        if with_downsample:
            # Conv1d(Cin, Cout, 1); weight ~ N(0, 0.01) as in the module
            p["wd"] = 0.01 * jax.random.normal(ks[12], (C_out, C_in, 1), jnp.float32)
            p["bd"] = 0.1 * jax.random.normal(ks[13], (C_out,), jnp.float32)
        return p, ks[14]

    key = jax.random.PRNGKey(0)
    cases = [
        # (B, C_in, C_out, L, K, dilation)  -- downsample iff C_in != C_out
        (4, 4, 8, 16, 3, 2),   # downsample residual, grid extent 2
        (2, 8, 8, 19, 3, 1),   # identity residual, L not a multiple of 8
    ]
    for (B, C_in, C_out, L, K, dil) in cases:
        key, sub = jax.random.split(key)
        params, xkey = make_params(sub, C_in, C_out, K,
                                   with_downsample=(C_in != C_out))
        x = jax.random.normal(xkey, (B, C_in, L), jnp.float32)

        fwd = jax.jit(functools.partial(conv_block_1d_forward,
                                        kernel_size=K, dilation=dil))
        out = jax.block_until_ready(fwd(x, params))
        assert out.shape == (B, C_out, L), out.shape

        # (1) Tight semantics check vs a reference using the same bf16 inputs.
        ref_b = reference_forward(x, params, kernel_size=K, dilation=dil,
                                  compute_dtype=jnp.bfloat16)
        err1 = float(jnp.max(jnp.abs(out - ref_b)))
        assert jnp.allclose(out, ref_b, rtol=5e-3, atol=5e-3), \
            (err1, (B, C_in, C_out, L, K, dil))

        # (2) Precision sanity check vs the pure-f32 reference.
        ref_f = reference_forward(x, params, kernel_size=K, dilation=dil)
        err2 = float(jnp.max(jnp.abs(out - ref_f)))
        assert jnp.allclose(out, ref_f, rtol=6e-2, atol=6e-2), \
            (err2, (B, C_in, C_out, L, K, dil))

    print("KERNEL_OK")
</pallas_src>

<mosaic_0001>
module attributes {stable_mosaic.version = 11 : i64} {
  func.func @_convblock_kernel(%arg0: i32, %arg1: memref<2x20x4xbf16, #tpu.memory_space<vmem>>, %arg2: memref<3x4x8xbf16, #tpu.memory_space<vmem>>, %arg3: memref<1x8xf32, #tpu.memory_space<vmem>>, %arg4: memref<1x8xf32, #tpu.memory_space<vmem>>, %arg5: memref<3x8x8xbf16, #tpu.memory_space<vmem>>, %arg6: memref<1x8xf32, #tpu.memory_space<vmem>>, %arg7: memref<1x8xf32, #tpu.memory_space<vmem>>, %arg8: memref<4x8xbf16, #tpu.memory_space<vmem>>, %arg9: memref<1x8xf32, #tpu.memory_space<vmem>>, %arg10: memref<2x16x8xf32, #tpu.memory_space<vmem>>, %arg11: memref<2x20x8xbf16, #tpu.memory_space<vmem>>) attributes {dimension_semantics = [#tpu.dimension_semantics<parallel>], iteration_bounds = array<i64: 2>, scalar_prefetch = 0 : i64, scratch_operands = 1 : i64, tpu.core_type = #tpu.core_type<tc>, window_params = [{transform_indices = @transform_0, window_bounds = array<i64: 2, 20, 4>}, {pipeline_mode = #tpu.pipeline_mode<synchronous>, transform_indices = @transform_1, window_bounds = array<i64: 3, 4, 8>}, {pipeline_mode = #tpu.pipeline_mode<synchronous>, transform_indices = @transform_2, window_bounds = array<i64: 1, 8>}, {pipeline_mode = #tpu.pipeline_mode<synchronous>, transform_indices = @transform_3, window_bounds = array<i64: 1, 8>}, {pipeline_mode = #tpu.pipeline_mode<synchronous>, transform_indices = @transform_4, window_bounds = array<i64: 3, 8, 8>}, {pipeline_mode = #tpu.pipeline_mode<synchronous>, transform_indices = @transform_5, window_bounds = array<i64: 1, 8>}, {pipeline_mode = #tpu.pipeline_mode<synchronous>, transform_indices = @transform_6, window_bounds = array<i64: 1, 8>}, {pipeline_mode = #tpu.pipeline_mode<synchronous>, transform_indices = @transform_7, window_bounds = array<i64: 4, 8>}, {pipeline_mode = #tpu.pipeline_mode<synchronous>, transform_indices = @transform_8, window_bounds = array<i64: 1, 8>}, {transform_indices = @transform_9, window_bounds = array<i64: 2, 16, 8>}]} {
    %c0 = arith.constant 0 : index
    %c2 = arith.constant 2 : index
    %c0_0 = arith.constant 0 : index
    %0 = vector.load %arg1[%c0, %c2, %c0_0] : memref<2x20x4xbf16, #tpu.memory_space<vmem>>, vector<2x16x4xbf16>
    %1 = vector.shape_cast %0 : vector<2x16x4xbf16> to vector<32x4xbf16>
    %c0_1 = arith.constant 0 : index
    %c0_2 = arith.constant 0 : index
    %2 = vector.load %arg8[%c0_1, %c0_2] : memref<4x8xbf16, #tpu.memory_space<vmem>>, vector<4x8xbf16>
    %cst = arith.constant dense<0.000000e+00> : vector<32x8xf32>
    %3 = tpu.matmul %1, %2, %cst {dimension_numbers = #tpu.dot_dimension_numbers<[1], [0], [0], [1], [0, 0, 1, 1], [], []>} : vector<32x4xbf16>, vector<4x8xbf16>, vector<32x8xf32> -> vector<32x8xf32>
    %c0_3 = arith.constant 0 : index
    %c0_4 = arith.constant 0 : index
    %4 = vector.load %arg9[%c0_3, %c0_4] : memref<1x8xf32, #tpu.memory_space<vmem>>, vector<1x8xf32>
    %5 = vector.broadcast %4 : vector<1x8xf32> to vector<32x8xf32>
    %6 = arith.addf %3, %5 : vector<32x8xf32>
    %c0_5 = arith.constant 0 : index
    %c0_6 = arith.constant 0 : index
    %c0_7 = arith.constant 0 : index
    %7 = vector.load %arg1[%c0_5, %c0_6, %c0_7] : memref<2x20x4xbf16, #tpu.memory_space<vmem>>, vector<2x16x4xbf16>
    %8 = vector.shape_cast %7 : vector<2x16x4xbf16> to vector<32x4xbf16>
    %c0_8 = arith.constant 0 : index
    %c0_9 = arith.constant 0 : index
    %c0_10 = arith.constant 0 : index
    %9 = vector.load %arg2[%c0_8, %c0_9, %c0_10] : memref<3x4x8xbf16, #tpu.memory_space<vmem>>, vector<1x4x8xbf16>
    %10 = vector.shape_cast %9 : vector<1x4x8xbf16> to vector<4x8xbf16>
    %cst_11 = arith.constant dense<0.000000e+00> : vector<32x8xf32>
    %11 = tpu.matmul %8, %10, %cst_11 {dimension_numbers = #tpu.dot_dimension_numbers<[1], [0], [0], [1], [0, 0, 1, 1], [], []>} : vector<32x4xbf16>, vector<4x8xbf16>, vector<32x8xf32> -> vector<32x8xf32>
    %c0_12 = arith.constant 0 : index
    %c2_13 = arith.constant 2 : index
    %c0_14 = arith.constant 0 : index
    %12 = vector.load %arg1[%c0_12, %c2_13, %c0_14] : memref<2x20x4xbf16, #tpu.memory_space<vmem>>, vector<2x16x4xbf16>
    %13 = vector.shape_cast %12 : vector<2x16x4xbf16> to vector<32x4xbf16>
    %c1 = arith.constant 1 : index
    %c0_15 = arith.constant 0 : index
    %c0_16 = arith.constant 0 : index
    %14 = vector.load %arg2[%c1, %c0_15, %c0_16] : memref<3x4x8xbf16, #tpu.memory_space<vmem>>, vector<1x4x8xbf16>
    %15 = vector.shape_cast %14 : vector<1x4x8xbf16> to vector<4x8xbf16>
    %cst_17 = arith.constant dense<0.000000e+00> : vector<32x8xf32>
    %16 = tpu.matmul %13, %15, %cst_17 {dimension_numbers = #tpu.dot_dimension_numbers<[1], [0], [0], [1], [0, 0, 1, 1], [], []>} : vector<32x4xbf16>, vector<4x8xbf16>, vector<32x8xf32> -> vector<32x8xf32>
    %17 = arith.addf %11, %16 : vector<32x8xf32>
    %c0_18 = arith.constant 0 : index
    %c4 = arith.constant 4 : index
    %c0_19 = arith.constant 0 : index
    %18 = vector.load %arg1[%c0_18, %c4, %c0_19] : memref<2x20x4xbf16, #tpu.memory_space<vmem>>, vector<2x16x4xbf16>
    %19 = vector.shape_cast %18 : vector<2x16x4xbf16> to vector<32x4xbf16>
    %c2_20 = arith.constant 2 : index
    %c0_21 = arith.constant 0 : index
    %c0_22 = arith.constant 0 : index
    %20 = vector.load %arg2[%c2_20, %c0_21, %c0_22] : memref<3x4x8xbf16, #tpu.memory_space<vmem>>, vector<1x4x8xbf16>
    %21 = vector.shape_cast %20 : vector<1x4x8xbf16> to vector<4x8xbf16>
    %cst_23 = arith.constant dense<0.000000e+00> : vector<32x8xf32>
    %22 = tpu.matmul %19, %21, %cst_23 {dimension_numbers = #tpu.dot_dimension_numbers<[1], [0], [0], [1], [0, 0, 1, 1], [], []>} : vector<32x4xbf16>, vector<4x8xbf16>, vector<32x8xf32> -> vector<32x8xf32>
    %23 = arith.addf %17, %22 : vector<32x8xf32>
    %c0_24 = arith.constant 0 : index
    %c0_25 = arith.constant 0 : index
    %24 = vector.load %arg3[%c0_24, %c0_25] : memref<1x8xf32, #tpu.memory_space<vmem>>, vector<1x8xf32>
    %25 = vector.broadcast %24 : vector<1x8xf32> to vector<32x8xf32>
    %26 = arith.mulf %23, %25 : vector<32x8xf32>
    %c0_26 = arith.constant 0 : index
    %c0_27 = arith.constant 0 : index
    %27 = vector.load %arg4[%c0_26, %c0_27] : memref<1x8xf32, #tpu.memory_space<vmem>>, vector<1x8xf32>
    %28 = vector.broadcast %27 : vector<1x8xf32> to vector<32x8xf32>
    %29 = arith.addf %26, %28 : vector<32x8xf32>
    %cst_28 = arith.constant 0.000000e+00 : f32
    %30 = vector.broadcast %cst_28 : f32 to vector<32x8xf32>
    %31 = arith.maximumf %29, %30 : vector<32x8xf32>
    %cst_29 = arith.constant 0.000000e+00 : bf16
    %32 = vector.broadcast %cst_29 : bf16 to vector<2x2x8xbf16>
    %c0_30 = arith.constant 0 : index
    %c0_31 = arith.constant 0 : index
    %c0_32 = arith.constant 0 : index
    %33 = vector.load %arg11[%c0_30, %c0_31, %c0_32] : memref<2x20x8xbf16, #tpu.memory_space<vmem>>, vector<2x2x8xbf16>
    tpu.vector_store %arg11[%c0_30, %c0_31, %c0_32], %32 {strides = array<i32>} : memref<2x20x8xbf16, #tpu.memory_space<vmem>>, vector<2x2x8xbf16>,
    %cst_33 = arith.constant 0.000000e+00 : bf16
    %34 = vector.broadcast %cst_33 : bf16 to vector<2x2x8xbf16>
    %c0_34 = arith.constant 0 : index
    %c18 = arith.constant 18 : index
    %c0_35 = arith.constant 0 : index
    %35 = vector.load %arg11[%c0_34, %c18, %c0_35] : memref<2x20x8xbf16, #tpu.memory_space<vmem>>, vector<2x2x8xbf16>
    tpu.vector_store %arg11[%c0_34, %c18, %c0_35], %34 {strides = array<i32>} : memref<2x20x8xbf16, #tpu.memory_space<vmem>>, vector<2x2x8xbf16>,
    %36 = vector.shape_cast %31 : vector<32x8xf32> to vector<2x16x8xf32>
    %37 = arith.truncf %36 : vector<2x16x8xf32> to vector<2x16x8xbf16>
    %c0_36 = arith.constant 0 : index
    %c2_37 = arith.constant 2 : index
    %c0_38 = arith.constant 0 : index
    %38 = vector.load %arg11[%c0_36, %c2_37, %c0_38] : memref<2x20x8xbf16, #tpu.memory_space<vmem>>, vector<2x16x8xbf16>
    tpu.vector_store %arg11[%c0_36, %c2_37, %c0_38], %37 {strides = array<i32>} : memref<2x20x8xbf16, #tpu.memory_space<vmem>>, vector<2x16x8xbf16>,
    %c0_39 = arith.constant 0 : index
    %c0_40 = arith.constant 0 : index
    %c0_41 = arith.constant 0 : index
    %39 = vector.load %arg11[%c0_39, %c0_40, %c0_41] : memref<2x20x8xbf16, #tpu.memory_space<vmem>>, vector<2x16x8xbf16>
    %40 = vector.shape_cast %39 : vector<2x16x8xbf16> to vector<32x8xbf16>
    %c0_42 = arith.constant 0 : index
    %c0_43 = arith.constant 0 : index
    %c0_44 = arith.constant 0 : index
    %41 = vector.load %arg5[%c0_42, %c0_43, %c0_44] : memref<3x8x8xbf16, #tpu.memory_space<vmem>>, vector<1x8x8xbf16>
    %42 = vector.shape_cast %41 : vector<1x8x8xbf16> to vector<8x8xbf16>
    %cst_45 = arith.constant dense<0.000000e+00> : vector<32x8xf32>
    %43 = tpu.matmul %40, %42, %cst_45 {dimension_numbers = #tpu.dot_dimension_numbers<[1], [0], [0], [1], [0, 0, 1, 1], [], []>} : vector<32x8xbf16>, vector<8x8xbf16>, vector<32x8xf32> -> vector<32x8xf32>
    %c0_46 = arith.constant 0 : index
    %c2_47 = arith.constant 2 : index
    %c0_48 = arith.constant 0 : index
    %44 = vector.load %arg11[%c0_46, %c2_47, %c0_48] : memref<2x20x8xbf16, #tpu.memory_space<vmem>>, vector<2x16x8xbf16>
    %45 = vector.shape_cast %44 : vector<2x16x8xbf16> to vector<32x8xbf16>
    %c1_49 = arith.constant 1 : index
    %c0_50 = arith.constant 0 : index
    %c0_51 = arith.constant 0 : index
    %46 = vector.load %arg5[%c1_49, %c0_50, %c0_51] : memref<3x8x8xbf16, #tpu.memory_space<vmem>>, vector<1x8x8xbf16>
    %47 = vector.shape_cast %46 : vector<1x8x8xbf16> to vector<8x8xbf16>
    %cst_52 = arith.constant dense<0.000000e+00> : vector<32x8xf32>
    %48 = tpu.matmul %45, %47, %cst_52 {dimension_numbers = #tpu.dot_dimension_numbers<[1], [0], [0], [1], [0, 0, 1, 1], [], []>} : vector<32x8xbf16>, vector<8x8xbf16>, vector<32x8xf32> -> vector<32x8xf32>
    %49 = arith.addf %43, %48 : vector<32x8xf32>
    %c0_53 = arith.constant 0 : index
    %c4_54 = arith.constant 4 : index
    %c0_55 = arith.constant 0 : index
    %50 = vector.load %arg11[%c0_53, %c4_54, %c0_55] : memref<2x20x8xbf16, #tpu.memory_space<vmem>>, vector<2x16x8xbf16>
    %51 = vector.shape_cast %50 : vector<2x16x8xbf16> to vector<32x8xbf16>
    %c2_56 = arith.constant 2 : index
    %c0_57 = arith.constant 0 : index
    %c0_58 = arith.constant 0 : index
    %52 = vector.load %arg5[%c2_56, %c0_57, %c0_58] : memref<3x8x8xbf16, #tpu.memory_space<vmem>>, vector<1x8x8xbf16>
    %53 = vector.shape_cast %52 : vector<1x8x8xbf16> to vector<8x8xbf16>
    %cst_59 = arith.constant dense<0.000000e+00> : vector<32x8xf32>
    %54 = tpu.matmul %51, %53, %cst_59 {dimension_numbers = #tpu.dot_dimension_numbers<[1], [0], [0], [1], [0, 0, 1, 1], [], []>} : vector<32x8xbf16>, vector<8x8xbf16>, vector<32x8xf32> -> vector<32x8xf32>
    %55 = arith.addf %49, %54 : vector<32x8xf32>
    %c0_60 = arith.constant 0 : index
    %c0_61 = arith.constant 0 : index
    %56 = vector.load %arg6[%c0_60, %c0_61] : memref<1x8xf32, #tpu.memory_space<vmem>>, vector<1x8xf32>
    %57 = vector.broadcast %56 : vector<1x8xf32> to vector<32x8xf32>
    %58 = arith.mulf %55, %57 : vector<32x8xf32>
    %c0_62 = arith.constant 0 : index
    %c0_63 = arith.constant 0 : index
    %59 = vector.load %arg7[%c0_62, %c0_63] : memref<1x8xf32, #tpu.memory_space<vmem>>, vector<1x8xf32>
    %60 = vector.broadcast %59 : vector<1x8xf32> to vector<32x8xf32>
    %61 = arith.addf %58, %60 : vector<32x8xf32>
    %cst_64 = arith.constant 0.000000e+00 : f32
    %62 = vector.broadcast %cst_64 : f32 to vector<32x8xf32>
    %63 = arith.maximumf %61, %62 : vector<32x8xf32>
    %64 = arith.addf %63, %6 : vector<32x8xf32>
    %cst_65 = arith.constant 0.000000e+00 : f32
    %65 = vector.broadcast %cst_65 : f32 to vector<32x8xf32>
    %66 = arith.maximumf %64, %65 : vector<32x8xf32>
    %67 = vector.shape_cast %66 : vector<32x8xf32> to vector<2x16x8xf32>
    %c0_66 = arith.constant 0 : index
    %c0_67 = arith.constant 0 : index
    %c0_68 = arith.constant 0 : index
    %68 = vector.load %arg10[%c0_66, %c0_67, %c0_68] : memref<2x16x8xf32, #tpu.memory_space<vmem>>, vector<2x16x8xf32>
    tpu.vector_store %arg10[%c0_66, %c0_67, %c0_68], %67 {strides = array<i32>} : memref<2x16x8xf32, #tpu.memory_space<vmem>>, vector<2x16x8xf32>,
    return
  }
  func.func @transform_0(%arg0: i32) -> (i32, i32, i32) {
    %c0_i32 = arith.constant 0 : i32
    %c0_i32_0 = arith.constant 0 : i32
    %c0_i32_1 = arith.constant 0 : i32
    return %arg0, %c0_i32, %c0_i32_0 : i32, i32, i32
  }
  func.func @transform_1(%arg0: i32) -> (i32, i32, i32) {
    %c0_i32 = arith.constant 0 : i32
    %c0_i32_0 = arith.constant 0 : i32
    %c0_i32_1 = arith.constant 0 : i32
    %c0_i32_2 = arith.constant 0 : i32
    return %c0_i32, %c0_i32_0, %c0_i32_1 : i32, i32, i32
  }
  func.func @transform_2(%arg0: i32) -> (i32, i32) {
    %c0_i32 = arith.constant 0 : i32
    %c0_i32_0 = arith.constant 0 : i32
    %c0_i32_1 = arith.constant 0 : i32
    return %c0_i32, %c0_i32_0 : i32, i32
  }
  func.func @transform_3(%arg0: i32) -> (i32, i32) {
    %c0_i32 = arith.constant 0 : i32
    %c0_i32_0 = arith.constant 0 : i32
    %c0_i32_1 = arith.constant 0 : i32
    return %c0_i32, %c0_i32_0 : i32, i32
  }
  func.func @transform_4(%arg0: i32) -> (i32, i32, i32) {
    %c0_i32 = arith.constant 0 : i32
    %c0_i32_0 = arith.constant 0 : i32
    %c0_i32_1 = arith.constant 0 : i32
    %c0_i32_2 = arith.constant 0 : i32
    return %c0_i32, %c0_i32_0, %c0_i32_1 : i32, i32, i32
  }
  func.func @transform_5(%arg0: i32) -> (i32, i32) {
    %c0_i32 = arith.constant 0 : i32
    %c0_i32_0 = arith.constant 0 : i32
    %c0_i32_1 = arith.constant 0 : i32
    return %c0_i32, %c0_i32_0 : i32, i32
  }
  func.func @transform_6(%arg0: i32) -> (i32, i32) {
    %c0_i32 = arith.constant 0 : i32
    %c0_i32_0 = arith.constant 0 : i32
    %c0_i32_1 = arith.constant 0 : i32
    return %c0_i32, %c0_i32_0 : i32, i32
  }
  func.func @transform_7(%arg0: i32) -> (i32, i32) {
    %c0_i32 = arith.constant 0 : i32
    %c0_i32_0 = arith.constant 0 : i32
    %c0_i32_1 = arith.constant 0 : i32
    return %c0_i32, %c0_i32_0 : i32, i32
  }
  func.func @transform_8(%arg0: i32) -> (i32, i32) {
    %c0_i32 = arith.constant 0 : i32
    %c0_i32_0 = arith.constant 0 : i32
    %c0_i32_1 = arith.constant 0 : i32
    return %c0_i32, %c0_i32_0 : i32, i32
  }
  func.func @transform_9(%arg0: i32) -> (i32, i32, i32) {
    %c0_i32 = arith.constant 0 : i32
    %c0_i32_0 = arith.constant 0 : i32
    %c0_i32_1 = arith.constant 0 : i32
    return %arg0, %c0_i32, %c0_i32_0 : i32, i32, i32
  }
}

</mosaic_0001>

<llo_original>
// kernel: conv_block_1d_forward.1
$region0: #{conv_block_1d_forward.1}
  #allocation0 [shape = 'u32[]', space=smem, size = 0x4, offset = 0x4, fixed_abs, tag = 'smem constant byte address 0x4 - core index']
  #allocation1 [shape = 'u32[144,128]{1,0:T(1,128)}', space=vmem, size = 0x12000, scoped, tag = 'internal scratch']
  #allocation2 [shape = 'bf16[2,20,8]{2,1,0:T(8,128)(2,1)}', space=vmem, size = 0x3000, scoped, tag = 'scratch operand']
  %s0 = inlined_call_operand.vmem [shape: bf16[4,20,4], index: 0, kind: input, shape index: {}]
  %s1 = inlined_call_operand.vmem [shape: bf16[3,4,8], index: 1, kind: input, shape index: {}]
  %s2 = inlined_call_operand.vmem [shape: f32[1,8], index: 2, kind: input, shape index: {}]
  %s3 = inlined_call_operand.vmem [shape: f32[1,8], index: 3, kind: input, shape index: {}]
  %s4 = inlined_call_operand.vmem [shape: bf16[3,8,8], index: 4, kind: input, shape index: {}]
  %s5 = inlined_call_operand.vmem [shape: f32[1,8], index: 5, kind: input, shape index: {}]
  %s6 = inlined_call_operand.vmem [shape: f32[1,8], index: 6, kind: input, shape index: {}]
  %s7 = inlined_call_operand.vmem [shape: bf16[4,8], index: 7, kind: input, shape index: {}]
  %s8 = inlined_call_operand.vmem [shape: f32[1,8], index: 8, kind: input, shape index: {}]
  %s9 = inlined_call_operand.vmem [shape: f32[4,16,8], index: 9, kind: output, shape index: {}]
  %s10 = sld [smem:[#allocation0]]
  $region69: #{conv_block_1d_forward.1} parent=0
    _
  %s12 = ssub.s32 1, %s10
  %s13 = scalar_select 0, %s12, %s10
  loop: start=0, step=1, limit=4
  $region2: #{conv_block_1d_forward.1} parent=0 // loop_pre_header
    _
  $region3: #{conv_block_1d_forward.1} parent=0 // loop_header
    %s15 = sphi 0, %s19
    %p16 = scmp.ge.s32.totalorder %s15, 4
    %s25 = sphi 0, %s27
    %s28 = sphi 0, %s25
    %s29 = sphi 0, %s28
    %s45 = sphi 0, %s29
    %s49 = sphi 0, %s49
    %s51 = sphi 0, %s49
    %s52 = sphi 0, %s51
    %s66 = sphi 0, %s52
    %s70 = sphi 0, %s70
    %s72 = sphi 0, %s70
    %s73 = sphi 0, %s72
    %s87 = sphi 0, %s73
    %s91 = sphi 0, %s91
    %s93 = sphi 0, %s91
    %s94 = sphi 0, %s93
    %s108 = sphi 0, %s94
    %s112 = sphi 0, %s112
    %s114 = sphi 0, %s112
    %s115 = sphi 0, %s114
    %s129 = sphi 0, %s115
    %s133 = sphi 0, %s133
    %s135 = sphi 0, %s133
    %s136 = sphi 0, %s135
    %s150 = sphi 0, %s136
    %s154 = sphi 0, %s154
    %s156 = sphi 0, %s154
    %s157 = sphi 0, %s156
    %s171 = sphi 0, %s157
    %s175 = sphi 0, %s175
    %s177 = sphi 0, %s175
    %s178 = sphi 0, %s177
    %s192 = sphi 0, %s178
    %s196 = sphi 0, %s196
    %s198 = sphi 0, %s196
    %s199 = sphi 0, %s198
    %s213 = sphi 0, %s199
    %s219 = sphi 0, %s221
    %s222 = sphi 0, %s219
    %s223 = sphi 0, %s222
    %s239 = sphi 0, %s223
  $region4: #{conv_block_1d_forward.1} parent=0 // loop_header_branch
    %18 = sbr.rel (%p16) target = $region8
  $region5: #{conv_block_1d_forward.1} parent=0 // loop_body
    %s20 = ssub.s32 %s15, 1
    %s21 = ssub.s32 %s15, 2
    %s22 = sadd.s32 %s15, 1
    %s23 = ssub.s32 %s15, %s22
    %p24 = scmp.eq.s32.totalorder %s23, 0
    %s26 = sadd.s32 %s25, 1
    %s27 = scalar_select %p24, %s25, %s26
    %p30 = pneg %p24
    %p31 = scmp.eq.s32.totalorder %s15, 1
    %p32 = por %p30, %p31
    %p33 = scmp.ne.s32.totalorder %s25, %s28
    %p34 = scmp.eq.s32.totalorder %s15, 0
    %p35 = por %p33, %p34
    %p36 = scmp.ne.s32.totalorder %s25, %s28
    %p37 = scmp.eq.s32.totalorder %s20, 1
    %p38 = por %p36, %p37
    %p39 = scmp.ne.s32.totalorder %s28, %s29
    %p40 = scmp.eq.s32.totalorder %s20, 0
    %p41 = por %p39, %p40
    %p42 = scmp.ne.s32.totalorder %s28, %s29
    %p43 = scmp.eq.s32.totalorder %s21, 1
    %p44 = por %p42, %p43
    %p46 = scmp.ne.s32.totalorder %s29, %s45
    %p47 = scmp.eq.s32.totalorder %s21, 0
    %p48 = por %p46, %p47
    %s50 = sadd.s32 %s49, 1
    %p53 = scmp.eq.s32.totalorder %s15, 1
    %p54 = scmp.ne.s32.totalorder %s49, %s51
    %p55 = scmp.eq.s32.totalorder %s15, 0
    %p56 = por %p54, %p55
    %p57 = scmp.ne.s32.totalorder %s49, %s51
    %p58 = scmp.eq.s32.totalorder %s20, 1
    %p59 = por %p57, %p58
    %p60 = scmp.ne.s32.totalorder %s51, %s52
    %p61 = scmp.eq.s32.totalorder %s20, 0
    %p62 = por %p60, %p61
    %p63 = scmp.ne.s32.totalorder %s51, %s52
    %p64 = scmp.eq.s32.totalorder %s21, 1
    %p65 = por %p63, %p64
    %p67 = scmp.ne.s32.totalorder %s52, %s66
    %p68 = scmp.eq.s32.totalorder %s21, 0
    %p69 = por %p67, %p68
    %s71 = sadd.s32 %s70, 1
    %p74 = scmp.eq.s32.totalorder %s15, 1
    %p75 = scmp.ne.s32.totalorder %s70, %s72
    %p76 = scmp.eq.s32.totalorder %s15, 0
    %p77 = por %p75, %p76
    %p78 = scmp.ne.s32.totalorder %s70, %s72
    %p79 = scmp.eq.s32.totalorder %s20, 1
    %p80 = por %p78, %p79
    %p81 = scmp.ne.s32.totalorder %s72, %s73
    %p82 = scmp.eq.s32.totalorder %s20, 0
    %p83 = por %p81, %p82
    %p84 = scmp.ne.s32.totalorder %s72, %s73
    %p85 = scmp.eq.s32.totalorder %s21, 1
    %p86 = por %p84, %p85
    %p88 = scmp.ne.s32.totalorder %s73, %s87
    %p89 = scmp.eq.s32.totalorder %s21, 0
    %p90 = por %p88, %p89
    %s92 = sadd.s32 %s91, 1
    %p95 = scmp.eq.s32.totalorder %s15, 1
    %p96 = scmp.ne.s32.totalorder %s91, %s93
    %p97 = scmp.eq.s32.totalorder %s15, 0
    %p98 = por %p96, %p97
    %p99 = scmp.ne.s32.totalorder %s91, %s93
    %p100 = scmp.eq.s32.totalorder %s20, 1
    %p101 = por %p99, %p100
    %p102 = scmp.ne.s32.totalorder %s93, %s94
    %p103 = scmp.eq.s32.totalorder %s20, 0
    %p104 = por %p102, %p103
    %p105 = scmp.ne.s32.totalorder %s93, %s94
    %p106 = scmp.eq.s32.totalorder %s21, 1
    %p107 = por %p105, %p106
    %p109 = scmp.ne.s32.totalorder %s94, %s108
    %p110 = scmp.eq.s32.totalorder %s21, 0
    %p111 = por %p109, %p110
    %s113 = sadd.s32 %s112, 1
    %p116 = scmp.eq.s32.totalorder %s15, 1
    %p117 = scmp.ne.s32.totalorder %s112, %s114
    %p118 = scmp.eq.s32.totalorder %s15, 0
    %p119 = por %p117, %p118
    %p120 = scmp.ne.s32.totalorder %s112, %s114
    %p121 = scmp.eq.s32.totalorder %s20, 1
    %p122 = por %p120, %p121
    %p123 = scmp.ne.s32.totalorder %s114, %s115
    %p124 = scmp.eq.s32.totalorder %s20, 0
    %p125 = por %p123, %p124
    %p126 = scmp.ne.s32.totalorder %s114, %s115
    %p127 = scmp.eq.s32.totalorder %s21, 1
    %p128 = por %p126, %p127
    %p130 = scmp.ne.s32.totalorder %s115, %s129
    %p131 = scmp.eq.s32.totalorder %s21, 0
    %p132 = por %p130, %p131
    %s134 = sadd.s32 %s133, 1
    %p137 = scmp.eq.s32.totalorder %s15, 1
    %p138 = scmp.ne.s32.totalorder %s133, %s135
    %p139 = scmp.eq.s32.totalorder %s15, 0
    %p140 = por %p138, %p139
    %p141 = scmp.ne.s32.totalorder %s133, %s135
    %p142 = scmp.eq.s32.totalorder %s20, 1
    %p143 = por %p141, %p142
    %p144 = scmp.ne.s32.totalorder %s135, %s136
    %p145 = scmp.eq.s32.totalorder %s20, 0
    %p146 = por %p144, %p145
    %p147 = scmp.ne.s32.totalorder %s135, %s136
    %p148 = scmp.eq.s32.totalorder %s21, 1
    %p149 = por %p147, %p148
    %p151 = scmp.ne.s32.totalorder %s136, %s150
    %p152 = scmp.eq.s32.totalorder %s21, 0
    %p153 = por %p151, %p152
    %s155 = sadd.s32 %s154, 1
    %p158 = scmp.eq.s32.totalorder %s15, 1
    %p159 = scmp.ne.s32.totalorder %s154, %s156
    %p160 = scmp.eq.s32.totalorder %s15, 0
    %p161 = por %p159, %p160
    %p162 = scmp.ne.s32.totalorder %s154, %s156
    %p163 = scmp.eq.s32.totalorder %s20, 1
    %p164 = por %p162, %p163
    %p165 = scmp.ne.s32.totalorder %s156, %s157
    %p166 = scmp.eq.s32.totalorder %s20, 0
    %p167 = por %p165, %p166
    %p168 = scmp.ne.s32.totalorder %s156, %s157
    %p169 = scmp.eq.s32.totalorder %s21, 1
    %p170 = por %p168, %p169
    %p172 = scmp.ne.s32.totalorder %s157, %s171
    %p173 = scmp.eq.s32.totalorder %s21, 0
    %p174 = por %p172, %p173
    %s176 = sadd.s32 %s175, 1
    %p179 = scmp.eq.s32.totalorder %s15, 1
    %p180 = scmp.ne.s32.totalorder %s175, %s177
    %p181 = scmp.eq.s32.totalorder %s15, 0
    %p182 = por %p180, %p181
    %p183 = scmp.ne.s32.totalorder %s175, %s177
    %p184 = scmp.eq.s32.totalorder %s20, 1
    %p185 = por %p183, %p184
    %p186 = scmp.ne.s32.totalorder %s177, %s178
    %p187 = scmp.eq.s32.totalorder %s20, 0
    %p188 = por %p186, %p187
    %p189 = scmp.ne.s32.totalorder %s177, %s178
    %p190 = scmp.eq.s32.totalorder %s21, 1
    %p191 = por %p189, %p190
    %p193 = scmp.ne.s32.totalorder %s178, %s192
    %p194 = scmp.eq.s32.totalorder %s21, 0
    %p195 = por %p193, %p194
    %s197 = sadd.s32 %s196, 1
    %p200 = scmp.eq.s32.totalorder %s15, 1
    %p201 = scmp.ne.s32.totalorder %s196, %s198
    %p202 = scmp.eq.s32.totalorder %s15, 0
    %p203 = por %p201, %p202
    %p204 = scmp.ne.s32.totalorder %s196, %s198
    %p205 = scmp.eq.s32.totalorder %s20, 1
    %p206 = por %p204, %p205
    %p207 = scmp.ne.s32.totalorder %s198, %s199
    %p208 = scmp.eq.s32.totalorder %s20, 0
    %p209 = por %p207, %p208
    %p210 = scmp.ne.s32.totalorder %s198, %s199
    %p211 = scmp.eq.s32.totalorder %s21, 1
    %p212 = por %p210, %p211
    %p214 = scmp.ne.s32.totalorder %s199, %s213
    %p215 = scmp.eq.s32.totalorder %s21, 0
    %p216 = por %p214, %p215
    %s217 = ssub.s32 %s15, %s22
    %p218 = scmp.eq.s32.totalorder %s217, 0
    %s220 = sadd.s32 %s219, 1
    %s221 = scalar_select %p218, %s219, %s220
    %p224 = pneg %p218
    %p225 = scmp.eq.s32.totalorder %s15, 1
    %p226 = por %p224, %p225
    %p227 = scmp.ne.s32.totalorder %s219, %s222
    %p228 = scmp.eq.s32.totalorder %s15, 0
    %p229 = por %p227, %p228
    %p230 = scmp.ne.s32.totalorder %s219, %s222
    %p231 = scmp.eq.s32.totalorder %s20, 1
    %p232 = por %p230, %p231
    %p233 = scmp.ne.s32.totalorder %s222, %s223
    %p234 = scmp.eq.s32.totalorder %s20, 0
    %p235 = por %p233, %p234
    %p236 = scmp.ne.s32.totalorder %s222, %s223
    %p237 = scmp.eq.s32.totalorder %s21, 1
    %p238 = por %p236, %p237
    %p240 = scmp.ne.s32.totalorder %s223, %s239
    %p241 = scmp.eq.s32.totalorder %s21, 0
    %p242 = por %p240, %p241
    %p243 = scmp.le.s32.totalorder 1, %s15
    %p244 = scmp.lt.s32.totalorder %s15, 3
    %p245 = pnand %p243, %p244
    %p246 = pneg %p245
    // Predicated region
    $region9: #{conv_block_1d_forward.1} parent=5 // pred_check
      _
    $region10: #{conv_block_1d_forward.1} parent=5 // pred_check_branch
      %248 = sbr.rel (%p245) target = $region12
    $region11: #{conv_block_1d_forward.1} parent=5 // pred_region
      %s249 = ssub.s32 %s15, 1
      // Predicated region
      $region13: #{conv_block_1d_forward.1} parent=11 // pred_check
        %p250 = pneg %p62
      $region14: #{conv_block_1d_forward.1} parent=11 // pred_check_branch
        %252 = sbr.rel (%p250) target = $region16
      $region15: #{conv_block_1d_forward.1} parent=11 // pred_region
        _
      $region16: #{conv_block_1d_forward.1} parent=11 // pred_fallthru
        _
      // Predicated region
      $region17: #{conv_block_1d_forward.1} parent=11 // pred_check
        %p253 = pneg %p83
      $region18: #{conv_block_1d_forward.1} parent=11 // pred_check_branch
        %255 = sbr.rel (%p253) target = $region20
      $region19: #{conv_block_1d_forward.1} parent=11 // pred_region
        _
      $region20: #{conv_block_1d_forward.1} parent=11 // pred_fallthru
        _
      // Predicated region
      $region21: #{conv_block_1d_forward.1} parent=11 // pred_check
        %p256 = pneg %p104
      $region22: #{conv_block_1d_forward.1} parent=11 // pred_check_branch
        %258 = sbr.rel (%p256) target = $region24
      $region23: #{conv_block_1d_forward.1} parent=11 // pred_region
        _
      $region24: #{conv_block_1d_forward.1} parent=11 // pred_fallthru
        _
      // Predicated region
      $region25: #{conv_block_1d_forward.1} parent=11 // pred_check
        %p259 = pneg %p125
      $region26: #{conv_block_1d_forward.1} parent=11 // pred_check_branch
        %261 = sbr.rel (%p259) target = $region28
      $region27: #{conv_block_1d_forward.1} parent=11 // pred_region
        _
      $region28: #{conv_block_1d_forward.1} parent=11 // pred_fallthru
        _
      // Predicated region
      $region29: #{conv_block_1d_forward.1} parent=11 // pred_check
        %p262 = pneg %p146
      $region30: #{conv_block_1d_forward.1} parent=11 // pred_check_branch
        %264 = sbr.rel (%p262) target = $region32
      $region31: #{conv_block_1d_forward.1} parent=11 // pred_region
        _
      $region32: #{conv_block_1d_forward.1} parent=11 // pred_fallthru
        _
      // Predicated region
      $region33: #{conv_block_1d_forward.1} parent=11 // pred_check
        %p265 = pneg %p167
      $region34: #{conv_block_1d_forward.1} parent=11 // pred_check_branch
        %267 = sbr.rel (%p265) target = $region36
      $region35: #{conv_block_1d_forward.1} parent=11 // pred_region
        _
      $region36: #{conv_block_1d_forward.1} parent=11 // pred_fallthru
        _
      // Predicated region
      $region37: #{conv_block_1d_forward.1} parent=11 // pred_check
        %p268 = pneg %p188
      $region38: #{conv_block_1d_forward.1} parent=11 // pred_check_branch
        %270 = sbr.rel (%p268) target = $region40
      $region39: #{conv_block_1d_forward.1} parent=11 // pred_region
        _
      $region40: #{conv_block_1d_forward.1} parent=11 // pred_fallthru
        _
      // Predicated region
      $region41: #{conv_block_1d_forward.1} parent=11 // pred_check
        %p271 = pneg %p209
      $region42: #{conv_block_1d_forward.1} parent=11 // pred_check_branch
        %273 = sbr.rel (%p271) target = $region44
      $region43: #{conv_block_1d_forward.1} parent=11 // pred_region
        _
      $region44: #{conv_block_1d_forward.1} parent=11 // pred_fallthru
        _
    $region12: #{conv_block_1d_forward.1} parent=5 // pred_fallthru
      _
    %p274 = scmp.lt.s32.totalorder %s15, 2
    // Predicated region
    $region45: #{conv_block_1d_forward.1} parent=5 // pred_check
      %p275 = pneg %p274
    $region46: #{conv_block_1d_forward.1} parent=5 // pred_check_branch
      %277 = sbr.rel (%p275) target = $region48
    $region47: #{conv_block_1d_forward.1} parent=5 // pred_region
      // Predicated region
      $region49: #{conv_block_1d_forward.1} parent=47 // pred_check
        %p278 = pneg %p35
      $region50: #{conv_block_1d_forward.1} parent=47 // pred_check_branch
        %280 = sbr.rel (%p278) target = $region52
      $region51: #{conv_block_1d_forward.1} parent=47 // pred_region
        %s281 = smul.u32 2, %s15
        %p282 = scmp.lt.s32.totalorder %s281, 3
        %s283 = scalar_select %p282, %s281, 3
        %s284 = smul.addr %s283, 3
        %s285 = smul.addr %s284, 4
        %s286 = scalar_lea.vmem %s0, %s285
        %s287 = smul.u32 2, %s15
      $region52: #{conv_block_1d_forward.1} parent=47 // pred_fallthru
        _
    $region48: #{conv_block_1d_forward.1} parent=5 // pred_fallthru
      _
    %p288 = scmp.le.s32.totalorder 1, %s15
    %p289 = scmp.lt.s32.totalorder %s15, 3
    %p290 = pnand %p288, %p289
    %p291 = pneg %p290
    // Predicated region
    $region53: #{conv_block_1d_forward.1} parent=5 // pred_check
      _
    $region54: #{conv_block_1d_forward.1} parent=5 // pred_check_branch
      %293 = sbr.rel (%p290) target = $region56
    $region55: #{conv_block_1d_forward.1} parent=5 // pred_region
      %s294 = ssub.s32 %s15, 1
      %s295 = smul.u32 2, %s20
      %p296 = scmp.lt.s32.totalorder %s295, 3
      %s297 = scalar_select %p296, %s295, 3
      %s298 = smul.addr %s297, 3
      %s299 = smul.addr %s298, 4
      %s300 = scalar_lea.vmem %s0, %s299
      %p301 = pneg %p41
      %p302 = pneg %p38
      %p303 = pneg %p62
      %p304 = pneg %p59
      %p305 = pneg %p83
      %p306 = pneg %p80
      %p307 = pneg %p104
      %p308 = pneg %p101
      %p309 = pneg %p125
      %p310 = pneg %p122
      %p311 = pneg %p146
      %p312 = pneg %p143
      %p313 = pneg %p167
      %p314 = pneg %p164
      %p315 = pneg %p188
      %p316 = pneg %p185
      %p317 = pneg %p209
      %p318 = pneg %p206
      %p319 = pneg %p235
      %p320 = pneg %p232
      %s321 = smul.u32 2, %s20
      %p322 = scmp.lt.s32.totalorder %s321, 3
      %s323 = scalar_select %p322, %s321, 3
      %s324 = smul.addr %s323, 2
      %s325 = smul.addr %s324, 8
      %s326 = scalar_lea.vmem %s9, %s325
      %s327 = smul.u32 2, %s20
      %p328 = scmp.lt.s32.totalorder %s327, 3
      %s329 = scalar_select %p328, %s327, 3
      %s330 = smul.addr %s329, 3
      %s331 = smul.addr %s330, 4
      %s332 = scalar_lea.vmem %s0, %s331
      %s333 = smul.u32 2, %s20
      %s334 = smul.u32 2, %s20
      %p335 = scmp.lt.s32.totalorder %s334, 3
      %s336 = scalar_select %p335, %s334, 3
      %s337 = smul.addr %s336, 2
      %s338 = smul.addr %s337, 8
      %s339 = scalar_lea.vmem %s9, %s338
      %s340 = smul.u32 2, %s20
      %v342 = vld [vmem:[%s332] sm:$0xe]
      %v343 = vld [vmem:[%s332 + $0x4] sm:$0xf]
      %v344 = vld [vmem:[%s332 + $0x8] sm:$0x1]
      %v345 = vld [vmem:[%s332 + $0xc] sm:$0xe]
      %v346 = vld [vmem:[%s332 + $0x10] sm:$0xf]
      %v347 = vld [vmem:[%s332 + $0x14] sm:$0x1]
      %vm354 = vcmask 1042432
      %vm355 = vcmask 1046532
      %vm356 = vmor %vm354, %vm355
      %v357 = vrot.slane %v342, 5
      %v358 = vrot.slane %v357, 4
      %v359 = vrot.slane %v343, 5
      %v360 = vsel %vm356, %v358, %v359
      %v361 = vrot.slane %v359, 4
      %v362 = vrot.slane %v344, 5
      %v363 = vsel %vm356, %v361, %v362
      %v364 = vrot.slane %v345, 5
      %v365 = vrot.slane %v364, 4
      %v366 = vrot.slane %v346, 5
      %v367 = vsel %vm356, %v365, %v366
      %v368 = vrot.slane %v366, 4
      %v369 = vrot.slane %v347, 5
      %v370 = vsel %vm356, %v368, %v369
      %v371 = vld [vmem:[%s7] sm:$0x3]
      %v372 = vld [vmem:[%s8] sm:$0x1]
      %v374 = vlaneseq
      %v375 = vshrl.u32 %v374, 7
      %v376 = vsub.s32 0, %v375
      %v377 = vrot.slane %v372, %v376
      %v379 = vunpack.c.l.b16 %v360
      %v380 = vunpack.c.l.b16 %v363
      %v381 = vunpack.c.l.b16 %v367
      %v382 = vunpack.c.l.b16 %v370
      %v383 = vpack.c.b16 %v380, %v379
      %v384 = vpack.c.b16 %v382, %v381
      %vm385 = vcmask 31744
      %v387 = vsel %vm385, %v383, 0
      %v390 = vsel %vm385, %v384, 0
      %vm392 = vcmask 1041408
      %v394 = vsel %vm392, %v371, 0
      %396 = vmatprep.subr.bf16.mxu0 0
      %397 = vmatpush1.bf16.msra.mxu0 %v394
      %398 = vmatprep.subr.bf16.mxu0 0
      %399 = vmatpush1.bf16.msra.mxu0 0
      %400 = vmatprep.subr.bf16.mxu0 0
      %401 = vmatpush1.bf16.msra.mxu0 0
      %402 = vmatprep.subr.bf16.mxu0 0
      %403 = vmatpush1.bf16.msra.mxu0 0
      %404 = vmatprep.subr.bf16.mxu0 0
      %405 = vmatpush1.bf16.msra.mxu0 0
      %406 = vmatprep.subr.bf16.mxu0 0
      %407 = vmatpush1.bf16.msra.mxu0 0
      %408 = vmatprep.subr.bf16.mxu0 0
      %409 = vmatpush1.bf16.msra.mxu0 0
      %410 = vmatprep.subr.bf16.mxu0 0
      %411 = vmatpush1.bf16.msra.mxu0 0
      %412 = vmatprep.subr.bf16.mxu0 0
      %413 = vmatpush1.bf16.msra.mxu0 0
      %414 = vmatprep.subr.bf16.mxu0 0
      %415 = vmatpush1.bf16.msra.mxu0 0
      %416 = vmatprep.subr.bf16.mxu0 0
      %417 = vmatpush1.bf16.msra.mxu0 0
      %418 = vmatprep.subr.bf16.mxu0 0
      %419 = vmatpush1.bf16.msra.mxu0 0
      %420 = vmatprep.subr.bf16.mxu0 0
      %421 = vmatpush1.bf16.msra.mxu0 0
      %422 = vmatprep.subr.bf16.mxu0 0
      %423 = vmatpush1.bf16.msra.mxu0 0
      %424 = vmatprep.subr.bf16.mxu0 0
      %425 = vmatpush1.bf16.msra.mxu0 0
      %426 = vmatprep.subr.bf16.mxu0 0
      %427 = vmatpush1.bf16.msra.mxu0 0
      %428 = vmatprep.mubr.bf16.mxu0 0
      %429 = vmatmul.mubr.bf16.gmra.mrb[0].mxu0 %v387
      %v430 = vpop.f32.mrb[0].mxu0
      %v431 = vadd.f32 %v377, %v430
      %v432 = vpop.f32.mrb[0].mxu0
      %v433 = vpop.f32.mrb[0].mxu0
      %v434 = vadd.f32 %v377, %v433
      %v435 = vpop.f32.mrb[0].mxu0
      %436 = vmatprep.mubr.bf16.mxu0 0
      %437 = vmatmul.mubr.bf16.gmra.mrb[0].mxu0 %v390
      %v438 = vpop.f32.mrb[0].mxu0
      %v439 = vadd.f32 %v377, %v438
      %v440 = vpop.f32.mrb[0].mxu0
      %v441 = vpop.f32.mrb[0].mxu0
      %v442 = vadd.f32 %v377, %v441
      %v443 = vpop.f32.mrb[0].mxu0
      %444 = vdwg.mxu0
      %v445 = vld [vmem:[%s332] sm:$0xf]
      %v446 = vld [vmem:[%s332 + $0x4] sm:$0xf]
      %v447 = vld [vmem:[%s332 + $0xc] sm:$0xf]
      %v448 = vld [vmem:[%s332 + $0x10] sm:$0xf]
      %v449 = vld [vmem:[%s1] sm:$0x3]
      %s450 = scalar_lea.vmem %s1, 2
      %v451 = vld [vmem:[%s450] sm:$0x3]
      %v453 = vsel %vm392, %v451, 0
      %455 = vmatprep.subr.bf16.mxu0 0
      %456 = vmatpush1.bf16.msra.mxu0 %v453
      %457 = vmatprep.subr.bf16.mxu0 0
      %458 = vmatpush1.bf16.msra.mxu0 0
      %459 = vmatprep.subr.bf16.mxu0 0
      %460 = vmatpush1.bf16.msra.mxu0 0
      %461 = vmatprep.subr.bf16.mxu0 0
      %462 = vmatpush1.bf16.msra.mxu0 0
      %463 = vmatprep.subr.bf16.mxu0 0
      %464 = vmatpush1.bf16.msra.mxu0 0
      %465 = vmatprep.subr.bf16.mxu0 0
      %466 = vmatpush1.bf16.msra.mxu0 0
      %467 = vmatprep.subr.bf16.mxu0 0
      %468 = vmatpush1.bf16.msra.mxu0 0
      %469 = vmatprep.subr.bf16.mxu0 0
      %470 = vmatpush1.bf16.msra.mxu0 0
      %471 = vmatprep.subr.bf16.mxu0 0
      %472 = vmatpush1.bf16.msra.mxu0 0
      %473 = vmatprep.subr.bf16.mxu0 0
      %474 = vmatpush1.bf16.msra.mxu0 0
      %475 = vmatprep.subr.bf16.mxu0 0
      %476 = vmatpush1.bf16.msra.mxu0 0
      %477 = vmatprep.subr.bf16.mxu0 0
      %478 = vmatpush1.bf16.msra.mxu0 0
      %479 = vmatprep.subr.bf16.mxu0 0
      %480 = vmatpush1.bf16.msra.mxu0 0
      %481 = vmatprep.subr.bf16.mxu0 0
      %482 = vmatpush1.bf16.msra.mxu0 0
      %483 = vmatprep.subr.bf16.mxu0 0
      %484 = vmatpush1.bf16.msra.mxu0 0
      %485 = vmatprep.subr.bf16.mxu0 0
      %486 = vmatpush1.bf16.msra.mxu0 0
      %487 = vmatprep.mubr.bf16.mxu0 0
      %488 = vmatmul.mubr.bf16.gmra.mrb[0].mxu0 %v387
      %v489 = vpop.f32.mrb[0].mxu0
      %v490 = vadd.f32 0.0, %v489
      %v491 = vpop.f32.mrb[0].mxu0
      %v492 = vpop.f32.mrb[0].mxu0
      %v493 = vadd.f32 0.0, %v492
      %v494 = vpop.f32.mrb[0].mxu0
      %495 = vmatprep.mubr.bf16.mxu0 0
      %496 = vmatmul.mubr.bf16.gmra.mrb[0].mxu0 %v390
      %v497 = vpop.f32.mrb[0].mxu0
      %v498 = vadd.f32 0.0, %v497
      %v499 = vpop.f32.mrb[0].mxu0
      %v500 = vpop.f32.mrb[0].mxu0
      %v501 = vadd.f32 0.0, %v500
      %v502 = vpop.f32.mrb[0].mxu0
      %503 = vdwg.mxu0
      %v508 = vunpack.c.l.b16 %v445
      %v509 = vunpack.c.l.b16 %v446
      %v510 = vunpack.c.l.b16 %v447
      %v511 = vunpack.c.l.b16 %v448
      %v512 = vpack.c.b16 %v509, %v508
      %v513 = vpack.c.b16 %v511, %v510
      %v515 = vsel %vm385, %v512, 0
      %v518 = vsel %vm385, %v513, 0
      %v521 = vsel %vm392, %v449, 0
      %523 = vmatprep.subr.bf16.mxu0 0
      %524 = vmatpush1.bf16.msra.mxu0 %v521
      %525 = vmatprep.subr.bf16.mxu0 0
      %526 = vmatpush1.bf16.msra.mxu0 0
      %527 = vmatprep.subr.bf16.mxu0 0
      %528 = vmatpush1.bf16.msra.mxu0 0
      %529 = vmatprep.subr.bf16.mxu0 0
      %530 = vmatpush1.bf16.msra.mxu0 0
      %531 = vmatprep.subr.bf16.mxu0 0
      %532 = vmatpush1.bf16.msra.mxu0 0
      %533 = vmatprep.subr.bf16.mxu0 0
      %534 = vmatpush1.bf16.msra.mxu0 0
      %535 = vmatprep.subr.bf16.mxu0 0
      %536 = vmatpush1.bf16.msra.mxu0 0
      %537 = vmatprep.subr.bf16.mxu0 0
      %538 = vmatpush1.bf16.msra.mxu0 0
      %539 = vmatprep.subr.bf16.mxu0 0
      %540 = vmatpush1.bf16.msra.mxu0 0
      %541 = vmatprep.subr.bf16.mxu0 0
      %542 = vmatpush1.bf16.msra.mxu0 0
      %543 = vmatprep.subr.bf16.mxu0 0
      %544 = vmatpush1.bf16.msra.mxu0 0
      %545 = vmatprep.subr.bf16.mxu0 0
      %546 = vmatpush1.bf16.msra.mxu0 0
      %547 = vmatprep.subr.bf16.mxu0 0
      %548 = vmatpush1.bf16.msra.mxu0 0
      %549 = vmatprep.subr.bf16.mxu0 0
      %550 = vmatpush1.bf16.msra.mxu0 0
      %551 = vmatprep.subr.bf16.mxu0 0
      %552 = vmatpush1.bf16.msra.mxu0 0
      %553 = vmatprep.subr.bf16.mxu0 0
      %554 = vmatpush1.bf16.msra.mxu0 0
      %555 = vmatprep.mubr.bf16.mxu0 0
      %556 = vmatmul.mubr.bf16.gmra.mrb[0].mxu0 %v515
      %v557 = vpop.f32.mrb[0].mxu0
      %v558 = vadd.f32 %v490, %v557
      %v559 = vpop.f32.mrb[0].mxu0
      %v560 = vpop.f32.mrb[0].mxu0
      %v561 = vadd.f32 %v493, %v560
      %v562 = vpop.f32.mrb[0].mxu0
      %563 = vmatprep.mubr.bf16.mxu0 0
      %564 = vmatmul.mubr.bf16.gmra.mrb[0].mxu0 %v518
      %v565 = vpop.f32.mrb[0].mxu0
      %v566 = vadd.f32 %v498, %v565
      %v567 = vpop.f32.mrb[0].mxu0
      %v568 = vpop.f32.mrb[0].mxu0
      %v569 = vadd.f32 %v501, %v568
      %v570 = vpop.f32.mrb[0].mxu0
      %571 = vdwg.mxu0
      %v572 = vld [vmem:[%s332] sm:$0xc]
      %v573 = vld [vmem:[%s332 + $0x8] sm:$0x3]
      %v574 = vld [vmem:[%s332 + $0xc] sm:$0xc]
      %v575 = vld [vmem:[%s332 + $0x14] sm:$0x3]
      %vm580 = vcmask 1041408
      %vm581 = vcmask 1045508
      %vm582 = vmor %vm580, %vm581
      %v583 = vrot.slane %v572, 6
      %v584 = vrot.slane %v583, 4
      %v585 = vrot.slane %v343, 6
      %v586 = vsel %vm582, %v584, %v585
      %v587 = vrot.slane %v585, 4
      %v588 = vrot.slane %v573, 6
      %v589 = vsel %vm582, %v587, %v588
      %v590 = vrot.slane %v574, 6
      %v591 = vrot.slane %v590, 4
      %v592 = vrot.slane %v346, 6
      %v593 = vsel %vm582, %v591, %v592
      %v594 = vrot.slane %v592, 4
      %v595 = vrot.slane %v575, 6
      %v596 = vsel %vm582, %v594, %v595
      %s597 = scalar_lea.vmem %s1, 4
      %v598 = vld [vmem:[%s597] sm:$0x3]
      %v599 = vunpack.c.l.b16 %v586
      %v600 = vunpack.c.l.b16 %v589
      %v601 = vunpack.c.l.b16 %v593
      %v602 = vunpack.c.l.b16 %v596
      %v603 = vpack.c.b16 %v600, %v599
      %v604 = vpack.c.b16 %v602, %v601
      %v606 = vsel %vm385, %v603, 0
      %v609 = vsel %vm385, %v604, 0
      %v612 = vsel %vm392, %v598, 0
      %614 = vmatprep.subr.bf16.mxu0 0
      %615 = vmatpush1.bf16.msra.mxu0 %v612
      %616 = vmatprep.subr.bf16.mxu0 0
      %617 = vmatpush1.bf16.msra.mxu0 0
      %618 = vmatprep.subr.bf16.mxu0 0
      %619 = vmatpush1.bf16.msra.mxu0 0
      %620 = vmatprep.subr.bf16.mxu0 0
      %621 = vmatpush1.bf16.msra.mxu0 0
      %622 = vmatprep.subr.bf16.mxu0 0
      %623 = vmatpush1.bf16.msra.mxu0 0
      %624 = vmatprep.subr.bf16.mxu0 0
      %625 = vmatpush1.bf16.msra.mxu0 0
      %626 = vmatprep.subr.bf16.mxu0 0
      %627 = vmatpush1.bf16.msra.mxu0 0
      %628 = vmatprep.subr.bf16.mxu0 0
      %629 = vmatpush1.bf16.msra.mxu0 0
      %630 = vmatprep.subr.bf16.mxu0 0
      %631 = vmatpush1.bf16.msra.mxu0 0
      %632 = vmatprep.subr.bf16.mxu0 0
      %633 = vmatpush1.bf16.msra.mxu0 0
      %634 = vmatprep.subr.bf16.mxu0 0
      %635 = vmatpush1.bf16.msra.mxu0 0
      %636 = vmatprep.subr.bf16.mxu0 0
      %637 = vmatpush1.bf16.msra.mxu0 0
      %638 = vmatprep.subr.bf16.mxu0 0
      %639 = vmatpush1.bf16.msra.mxu0 0
      %640 = vmatprep.subr.bf16.mxu0 0
      %641 = vmatpush1.bf16.msra.mxu0 0
      %642 = vmatprep.subr.bf16.mxu0 0
      %643 = vmatpush1.bf16.msra.mxu0 0
      %644 = vmatprep.subr.bf16.mxu0 0
      %645 = vmatpush1.bf16.msra.mxu0 0
      %646 = vmatprep.mubr.bf16.mxu0 0
      %647 = vmatmul.mubr.bf16.gmra.mrb[0].mxu0 %v606
      %v648 = vpop.f32.mrb[0].mxu0
      %v649 = vadd.f32 0.0, %v648
      %v650 = vpop.f32.mrb[0].mxu0
      %v651 = vpop.f32.mrb[0].mxu0
      %v652 = vadd.f32 0.0, %v651
      %v653 = vpop.f32.mrb[0].mxu0
      %654 = vmatprep.mubr.bf16.mxu0 0
      %655 = vmatmul.mubr.bf16.gmra.mrb[0].mxu0 %v609
      %v656 = vpop.f32.mrb[0].mxu0
      %v657 = vadd.f32 0.0, %v656
      %v658 = vpop.f32.mrb[0].mxu0
      %v659 = vpop.f32.mrb[0].mxu0
      %v660 = vadd.f32 0.0, %v659
      %v661 = vpop.f32.mrb[0].mxu0
      %662 = vdwg.mxu0
      %v663 = vadd.f32 %v558, %v649
      %v664 = vadd.f32 %v561, %v652
      %v665 = vadd.f32 %v566, %v657
      %v666 = vadd.f32 %v569, %v660
      %v667 = vld [vmem:[%s2] sm:$0x1]
      %v669 = vlaneseq
      %v670 = vshrl.u32 %v669, 7
      %v671 = vsub.s32 0, %v670
      %v672 = vrot.slane %v667, %v671
      %v674 = vmul.f32 %v663, %v672
      %v675 = vmul.f32 %v664, %v672
      %v676 = vmul.f32 %v665, %v672
      %v677 = vmul.f32 %v666, %v672
      %v678 = vld [vmem:[%s3] sm:$0x1]
      %v680 = vlaneseq
      %v681 = vshrl.u32 %v680, 7
      %v682 = vsub.s32 0, %v681
      %v683 = vrot.slane %v678, %v682
      %v685 = vadd.f32 %v674, %v683
      %v686 = vadd.f32 %v675, %v683
      %v687 = vadd.f32 %v676, %v683
      %v688 = vadd.f32 %v677, %v683
      %v689 = vmax.f32 %v685, 0.0
      %v690 = vmax.f32 %v686, 0.0
      %v691 = vmax.f32 %v687, 0.0
      %v692 = vmax.f32 %v688, 0.0
      %vm693 = vcmask 57344
      %694 = vst.msk [vmem:[#allocation2] sm:$0x1] %vm693, 0
      %695 = vst.msk [vmem:[#allocation2 + $0xc] sm:$0x1] %vm693, 0
      %vm696 = vcmask 58369
      %697 = vst.msk [vmem:[#allocation2 + $0x8] sm:$0x2] %vm696, 0
      %698 = vst.msk [vmem:[#allocation2 + $0x14] sm:$0x2] %vm696, 0
      %v699 = vpack.c.bf16 %v690, %v689
      %v700 = vpack.c.bf16 %v692, %v691
      %v703 = vunpack.c.l.b16 %v699
      %v704 = vunpack.c.h.b16 %v699
      %v705 = vunpack.c.l.b16 %v700
      %v706 = vunpack.c.h.b16 %v700
      %v707 = vpack.c.b16 %v703, %v703
      %v708 = vpack.c.b16 %v704, %v704
      %v709 = vpack.c.b16 %v705, %v705
      %v710 = vpack.c.b16 %v706, %v706
      %vm711 = vcmask 1040384
      %vm712 = vcmask 1044484
      %vm713 = vmor %vm711, %vm712
      %v714 = vrot.slane %v707, 7
      %v715 = vrot.slane %v714, 4
      %v716 = vrot.slane %v708, 7
      %v717 = vsel %vm713, %v715, %v716
      %v718 = vrot.slane %v716, 4
      %v719 = vrot.slane %v709, 7
      %v720 = vrot.slane %v719, 4
      %v721 = vrot.slane %v710, 7
      %v722 = vsel %vm713, %v720, %v721
      %v723 = vrot.slane %v721, 4
      %vm730 = vcmask 60417
      %731 = vst.msk [vmem:[#allocation2] sm:$0xe] %vm730, %v714
      %vm732 = vcmask 60416
      %733 = vst.msk [vmem:[#allocation2 + $0x4] sm:$0xf] %vm732, %v717
      %734 = vst.msk [vmem:[#allocation2 + $0x8] sm:$0x1] %vm693, %v718
      %735 = vst.msk [vmem:[#allocation2 + $0xc] sm:$0xe] %vm730, %v719
      %736 = vst.msk [vmem:[#allocation2 + $0x10] sm:$0xf] %vm732, %v722
      %737 = vst.msk [vmem:[#allocation2 + $0x14] sm:$0x1] %vm693, %v723
      %v738 = vld [vmem:[#allocation2] sm:$0xf]
      %v739 = vld [vmem:[#allocation2 + $0x4] sm:$0xf]
      %v740 = vld [vmem:[#allocation2 + $0xc] sm:$0xf]
      %v741 = vld [vmem:[#allocation2 + $0x10] sm:$0xf]
      %v742 = vld [vmem:[%s4] sm:$0xf]
      %v743 = vld [vmem:[#allocation2] sm:$0xe]
      %v744 = vld [vmem:[#allocation2 + $0x8] sm:$0x1]
      %v745 = vld [vmem:[#allocation2 + $0xc] sm:$0xe]
      %v746 = vld [vmem:[#allocation2 + $0x14] sm:$0x1]
      %v753 = vrot.slane %v743, 5
      %v754 = vrot.slane %v753, 4
      %v755 = vrot.slane %v739, 5
      %v756 = vsel %vm356, %v754, %v755
      %v757 = vrot.slane %v755, 4
      %v758 = vrot.slane %v744, 5
      %v759 = vsel %vm356, %v757, %v758
      %v760 = vrot.slane %v745, 5
      %v761 = vrot.slane %v760, 4
      %v762 = vrot.slane %v741, 5
      %v763 = vsel %vm356, %v761, %v762
      %v764 = vrot.slane %v762, 4
      %v765 = vrot.slane %v746, 5
      %v766 = vsel %vm356, %v764, %v765
      %s767 = scalar_lea.vmem %s4, 4
      %v768 = vld [vmem:[%s767] sm:$0xf]
      %v769 = vunpack.c.l.b16 %v756
      %v770 = vunpack.c.l.b16 %v759
      %v771 = vunpack.c.l.b16 %v763
      %v772 = vunpack.c.l.b16 %v766
      %v773 = vpack.c.b16 %v770, %v769
      %v774 = vpack.c.b16 %v772, %v771
      %vm775 = vcmask 64512
      %v777 = vsel %vm775, %v773, 0
      %v780 = vsel %vm775, %v774, 0
      %vm782 = vcmask 1043456
      %v784 = vsel %vm782, %v768, 0
      %786 = vmatprep.subr.bf16.mxu0 0
      %787 = vmatpush1.bf16.msra.mxu0 %v784
      %788 = vmatprep.subr.bf16.mxu0 0
      %789 = vmatpush1.bf16.msra.mxu0 0
      %790 = vmatprep.subr.bf16.mxu0 0
      %791 = vmatpush1.bf16.msra.mxu0 0
      %792 = vmatprep.subr.bf16.mxu0 0
      %793 = vmatpush1.bf16.msra.mxu0 0
      %794 = vmatprep.subr.bf16.mxu0 0
      %795 = vmatpush1.bf16.msra.mxu0 0
      %796 = vmatprep.subr.bf16.mxu0 0
      %797 = vmatpush1.bf16.msra.mxu0 0
      %798 = vmatprep.subr.bf16.mxu0 0
      %799 = vmatpush1.bf16.msra.mxu0 0
      %800 = vmatprep.subr.bf16.mxu0 0
      %801 = vmatpush1.bf16.msra.mxu0 0
      %802 = vmatprep.subr.bf16.mxu0 0
      %803 = vmatpush1.bf16.msra.mxu0 0
      %804 = vmatprep.subr.bf16.mxu0 0
      %805 = vmatpush1.bf16.msra.mxu0 0
      %806 = vmatprep.subr.bf16.mxu0 0
      %807 = vmatpush1.bf16.msra.mxu0 0
      %808 = vmatprep.subr.bf16.mxu0 0
      %809 = vmatpush1.bf16.msra.mxu0 0
      %810 = vmatprep.subr.bf16.mxu0 0
      %811 = vmatpush1.bf16.msra.mxu0 0
      %812 = vmatprep.subr.bf16.mxu0 0
      %813 = vmatpush1.bf16.msra.mxu0 0
      %814 = vmatprep.subr.bf16.mxu0 0
      %815 = vmatpush1.bf16.msra.mxu0 0
      %816 = vmatprep.subr.bf16.mxu0 0
      %817 = vmatpush1.bf16.msra.mxu0 0
      %818 = vmatprep.mubr.bf16.mxu0 0
      %819 = vmatmul.mubr.bf16.gmra.mrb[0].mxu0 %v777
      %v820 = vpop.f32.mrb[0].mxu0
      %v821 = vadd.f32 0.0, %v820
      %v822 = vpop.f32.mrb[0].mxu0
      %v823 = vpop.f32.mrb[0].mxu0
      %v824 = vadd.f32 0.0, %v823
      %v825 = vpop.f32.mrb[0].mxu0
      %826 = vmatprep.mubr.bf16.mxu0 0
      %827 = vmatmul.mubr.bf16.gmra.mrb[0].mxu0 %v780
      %v828 = vpop.f32.mrb[0].mxu0
      %v829 = vadd.f32 0.0, %v828
      %v830 = vpop.f32.mrb[0].mxu0
      %v831 = vpop.f32.mrb[0].mxu0
      %v832 = vadd.f32 0.0, %v831
      %v833 = vpop.f32.mrb[0].mxu0
      %834 = vdwg.mxu0
      %v837 = vunpack.c.l.b16 %v738
      %v838 = vunpack.c.l.b16 %v739
      %v839 = vunpack.c.l.b16 %v740
      %v840 = vunpack.c.l.b16 %v741
      %v841 = vpack.c.b16 %v838, %v837
      %v842 = vpack.c.b16 %v840, %v839
      %v844 = vsel %vm775, %v841, 0
      %v847 = vsel %vm775, %v842, 0
      %v850 = vsel %vm782, %v742, 0
      %852 = vmatprep.subr.bf16.mxu0 0
      %853 = vmatpush1.bf16.msra.mxu0 %v850
      %854 = vmatprep.subr.bf16.mxu0 0
      %855 = vmatpush1.bf16.msra.mxu0 0
      %856 = vmatprep.subr.bf16.mxu0 0
      %857 = vmatpush1.bf16.msra.mxu0 0
      %858 = vmatprep.subr.bf16.mxu0 0
      %859 = vmatpush1.bf16.msra.mxu0 0
      %860 = vmatprep.subr.bf16.mxu0 0
      %861 = vmatpush1.bf16.msra.mxu0 0
      %862 = vmatprep.subr.bf16.mxu0 0
      %863 = vmatpush1.bf16.msra.mxu0 0
      %864 = vmatprep.subr.bf16.mxu0 0
      %865 = vmatpush1.bf16.msra.mxu0 0
      %866 = vmatprep.subr.bf16.mxu0 0
      %867 = vmatpush1.bf16.msra.mxu0 0
      %868 = vmatprep.subr.bf16.mxu0 0
      %869 = vmatpush1.bf16.msra.mxu0 0
      %870 = vmatprep.subr.bf16.mxu0 0
      %871 = vmatpush1.bf16.msra.mxu0 0
      %872 = vmatprep.subr.bf16.mxu0 0
      %873 = vmatpush1.bf16.msra.mxu0 0
      %874 = vmatprep.subr.bf16.mxu0 0
      %875 = vmatpush1.bf16.msra.mxu0 0
      %876 = vmatprep.subr.bf16.mxu0 0
      %877 = vmatpush1.bf16.msra.mxu0 0
      %878 = vmatprep.subr.bf16.mxu0 0
      %879 = vmatpush1.bf16.msra.mxu0 0
      %880 = vmatprep.subr.bf16.mxu0 0
      %881 = vmatpush1.bf16.msra.mxu0 0
      %882 = vmatprep.subr.bf16.mxu0 0
      %883 = vmatpush1.bf16.msra.mxu0 0
      %884 = vmatprep.mubr.bf16.mxu0 0
      %885 = vmatmul.mubr.bf16.gmra.mrb[0].mxu0 %v844
      %v886 = vpop.f32.mrb[0].mxu0
      %v887 = vadd.f32 %v821, %v886
      %v888 = vpop.f32.mrb[0].mxu0
      %v889 = vpop.f32.mrb[0].mxu0
      %v890 = vadd.f32 %v824, %v889
      %v891 = vpop.f32.mrb[0].mxu0
      %892 = vmatprep.mubr.bf16.mxu0 0
      %893 = vmatmul.mubr.bf16.gmra.mrb[0].mxu0 %v847
      %v894 = vpop.f32.mrb[0].mxu0
      %v895 = vadd.f32 %v829, %v894
      %v896 = vpop.f32.mrb[0].mxu0
      %v897 = vpop.f32.mrb[0].mxu0
      %v898 = vadd.f32 %v832, %v897
      %v899 = vpop.f32.mrb[0].mxu0
      %900 = vdwg.mxu0
      %v901 = vld [vmem:[#allocation2] sm:$0xc]
      %v902 = vld [vmem:[#allocation2 + $0x8] sm:$0x3]
      %v903 = vld [vmem:[#allocation2 + $0xc] sm:$0xc]
      %v904 = vld [vmem:[#allocation2 + $0x14] sm:$0x3]
      %v909 = vrot.slane %v901, 6
      %v910 = vrot.slane %v909, 4
      %v911 = vrot.slane %v739, 6
      %v912 = vsel %vm582, %v910, %v911
      %v913 = vrot.slane %v911, 4
      %v914 = vrot.slane %v902, 6
      %v915 = vsel %vm582, %v913, %v914
      %v916 = vrot.slane %v903, 6
      %v917 = vrot.slane %v916, 4
      %v918 = vrot.slane %v741, 6
      %v919 = vsel %vm582, %v917, %v918
      %v920 = vrot.slane %v918, 4
      %v921 = vrot.slane %v904, 6
      %v922 = vsel %vm582, %v920, %v921
      %s923 = scalar_lea.vmem %s4, 8
      %v924 = vld [vmem:[%s923] sm:$0xf]
      %v925 = vunpack.c.l.b16 %v912
      %v926 = vunpack.c.l.b16 %v915
      %v927 = vunpack.c.l.b16 %v919
      %v928 = vunpack.c.l.b16 %v922
      %v929 = vpack.c.b16 %v926, %v925
      %v930 = vpack.c.b16 %v928, %v927
      %v932 = vsel %vm775, %v929, 0
      %v935 = vsel %vm775, %v930, 0
      %v938 = vsel %vm782, %v924, 0
      %940 = vmatprep.subr.bf16.mxu0 0
      %941 = vmatpush1.bf16.msra.mxu0 %v938
      %942 = vmatprep.subr.bf16.mxu0 0
      %943 = vmatpush1.bf16.msra.mxu0 0
      %944 = vmatprep.subr.bf16.mxu0 0
      %945 = vmatpush1.bf16.msra.mxu0 0
      %946 = vmatprep.subr.bf16.mxu0 0
      %947 = vmatpush1.bf16.msra.mxu0 0
      %948 = vmatprep.subr.bf16.mxu0 0
      %949 = vmatpush1.bf16.msra.mxu0 0
      %950 = vmatprep.subr.bf16.mxu0 0
      %951 = vmatpush1.bf16.msra.mxu0 0
      %952 = vmatprep.subr.bf16.mxu0 0
      %953 = vmatpush1.bf16.msra.mxu0 0
      %954 = vmatprep.subr.bf16.mxu0 0
      %955 = vmatpush1.bf16.msra.mxu0 0
      %956 = vmatprep.subr.bf16.mxu0 0
      %957 = vmatpush1.bf16.msra.mxu0 0
      %958 = vmatprep.subr.bf16.mxu0 0
      %959 = vmatpush1.bf16.msra.mxu0 0
      %960 = vmatprep.subr.bf16.mxu0 0
      %961 = vmatpush1.bf16.msra.mxu0 0
      %962 = vmatprep.subr.bf16.mxu0 0
      %963 = vmatpush1.bf16.msra.mxu0 0
      %964 = vmatprep.subr.bf16.mxu0 0
      %965 = vmatpush1.bf16.msra.mxu0 0
      %966 = vmatprep.subr.bf16.mxu0 0
      %967 = vmatpush1.bf16.msra.mxu0 0
      %968 = vmatprep.subr.bf16.mxu0 0
      %969 = vmatpush1.bf16.msra.mxu0 0
      %970 = vmatprep.subr.bf16.mxu0 0
      %971 = vmatpush1.bf16.msra.mxu0 0
      %972 = vmatprep.mubr.bf16.mxu0 0
      %973 = vmatmul.mubr.bf16.gmra.mrb[0].mxu0 %v932
      %v974 = vpop.f32.mrb[0].mxu0
      %v975 = vadd.f32 0.0, %v974
      %v976 = vpop.f32.mrb[0].mxu0
      %v977 = vpop.f32.mrb[0].mxu0
      %v978 = vadd.f32 0.0, %v977
      %v979 = vpop.f32.mrb[0].mxu0
      %980 = vmatprep.mubr.bf16.mxu0 0
      %981 = vmatmul.mubr.bf16.gmra.mrb[0].mxu0 %v935
      %v982 = vpop.f32.mrb[0].mxu0
      %v983 = vadd.f32 0.0, %v982
      %v984 = vpop.f32.mrb[0].mxu0
      %v985 = vpop.f32.mrb[0].mxu0
      %v986 = vadd.f32 0.0, %v985
      %v987 = vpop.f32.mrb[0].mxu0
      %988 = vdwg.mxu0
      %v989 = vadd.f32 %v887, %v975
      %v990 = vadd.f32 %v890, %v978
      %v991 = vadd.f32 %v895, %v983
      %v992 = vadd.f32 %v898, %v986
      %v993 = vld [vmem:[%s5] sm:$0x1]
      %v995 = vlaneseq
      %v996 = vshrl.u32 %v995, 7
      %v997 = vsub.s32 0, %v996
      %v998 = vrot.slane %v993, %v997
      %v1000 = vmul.f32 %v989, %v998
      %v1001 = vmul.f32 %v990, %v998
      %v1002 = vmul.f32 %v991, %v998
      %v1003 = vmul.f32 %v992, %v998
      %v1004 = vld [vmem:[%s6] sm:$0x1]
      %v1006 = vlaneseq
      %v1007 = vshrl.u32 %v1006, 7
      %v1008 = vsub.s32 0, %v1007
      %v1009 = vrot.slane %v1004, %v1008
      %v1011 = vadd.f32 %v1000, %v1009
      %v1012 = vadd.f32 %v1001, %v1009
      %v1013 = vadd.f32 %v1002, %v1009
      %v1014 = vadd.f32 %v1003, %v1009
      %v1015 = vmax.f32 %v1011, 0.0
      %v1016 = vmax.f32 %v1012, 0.0
      %v1017 = vmax.f32 %v1013, 0.0
      %v1018 = vmax.f32 %v1014, 0.0
      %v1019 = vadd.f32 %v1015, %v431
      %v1020 = vadd.f32 %v1016, %v434
      %v1021 = vadd.f32 %v1017, %v439
      %v1022 = vadd.f32 %v1018, %v442
      %v1023 = vmax.f32 %v1019, 0.0
      %v1024 = vmax.f32 %v1020, 0.0
      %v1025 = vmax.f32 %v1021, 0.0
      %v1026 = vmax.f32 %v1022, 0.0
      %1027 = vst.msk [vmem:[%s339] sm:$0xff] %vm775, %v1023
      %1028 = vst.msk [vmem:[%s339 + $0x8] sm:$0xff] %vm775, %v1024
      %1029 = vst.msk [vmem:[%s339 + $0x10] sm:$0xff] %vm775, %v1025
      %1030 = vst.msk [vmem:[%s339 + $0x18] sm:$0xff] %vm775, %v1026
      %s1031 = smul.u32 2, %s20
      %p1032 = scmp.lt.s32.totalorder %s1031, 3
      %s1033 = scalar_select %p1032, %s1031, 3
      %s1034 = smul.addr %s1033, 2
      %s1035 = smul.addr %s1034, 8
      %s1036 = scalar_lea.vmem %s9, %s1035
      // Predicated region
      $region57: #{conv_block_1d_forward.1} parent=55 // pred_check
        %p1037 = pneg %p232
      $region58: #{conv_block_1d_forward.1} parent=55 // pred_check_branch
        %1039 = sbr.rel (%p1037) target = $region60
      $region59: #{conv_block_1d_forward.1} parent=55 // pred_region
        %s1040 = smul.u32 2, %s20
      $region60: #{conv_block_1d_forward.1} parent=55 // pred_fallthru
        _
    $region56: #{conv_block_1d_forward.1} parent=5 // pred_fallthru
      _
    %p1041 = scmp.le.s32.totalorder 2, %s15
    // Predicated region
    $region61: #{conv_block_1d_forward.1} parent=5 // pred_check
      %p1042 = pneg %p1041
    $region62: #{conv_block_1d_forward.1} parent=5 // pred_check_branch
      %1044 = sbr.rel (%p1042) target = $region64
    $region63: #{conv_block_1d_forward.1} parent=5 // pred_region
      %s1045 = ssub.s32 %s15, 2
      // Predicated region
      $region65: #{conv_block_1d_forward.1} parent=63 // pred_check
        %p1046 = pneg %p238
      $region66: #{conv_block_1d_forward.1} parent=63 // pred_check_branch
        %1048 = sbr.rel (%p1046) target = $region68
      $region67: #{conv_block_1d_forward.1} parent=63 // pred_region
        %s1049 = smul.u32 2, %s21
        %p1050 = scmp.lt.s32.totalorder %s1049, 3
        %s1051 = scalar_select %p1050, %s1049, 3
        %s1052 = smul.addr %s1051, 2
        %s1053 = smul.addr %s1052, 8
        %s1054 = scalar_lea.vmem %s9, %s1053
      $region68: #{conv_block_1d_forward.1} parent=63 // pred_fallthru
        _
    $region64: #{conv_block_1d_forward.1} parent=5 // pred_fallthru
      _
  $region6: #{conv_block_1d_forward.1} parent=0 // loop_footer
    %s19 = sadd.s32 1, %s15
  $region7: #{conv_block_1d_forward.1} parent=0 // loop_footer_branch
    %14 = sbr.rel target = $region3
  $region8: #{conv_block_1d_forward.1} parent=0 // loop_exit
    _

</llo_original>
